<compile_context>
chip_gen: v6e
topology: v6e:2x2x1
jax: 0.10.0
libtpu: 0.0.40
codegen_flags: <defaults>
</compile_context>

<pallas_src>
import functools

import jax
import jax.numpy as jnp
from jax.experimental import pallas as pl
from jax.experimental.pallas import tpu as pltpu


_FALLBACK_VMEM_BYTES = 64 * 1024 * 1024  # conservative: v7x physical VMEM


def _vmem_limit_bytes():
    """Scoped-VMEM budget: ~3/4 of physical (≈96 MiB v5e/v6e, ≈48 MiB v7x)."""
    try:
        cap = pltpu.get_tpu_info().vmem_capacity_bytes
    except Exception:
        cap = _FALLBACK_VMEM_BYTES
    return int(cap) * 3 // 4


def _pick_row_tile(rows, vocab, in_bytes, vmem_limit):
    """Largest 8-aligned row tile whose per-step footprint fits the budget.

    Per-step footprint ≈ 2 * TM*V*in_bytes   (double-buffered native-width stream)
                       + ~2 * TM*V*4         (in-kernel f32 upcast / exp temps)
    """
    per_row = vocab * (2 * in_bytes + 8) + 64
    tile = int(0.7 * vmem_limit) // per_row
    tile = max(8, (tile // 8) * 8)
    tile = min(tile, 1024)  # per-step overhead fully amortized well before this
    # don't make the block bigger than the (8-row padded) problem itself
    tile = min(tile, max(8, ((rows + 7) // 8) * 8))
    return tile
    # TODO(synk): add an inner vocab grid axis with an online logsumexp for
    # very large vocabularies (>=128k) so tile size decouples from full-vocab
    # residency.


def _lm_criterion_kernel(logits_ref, target_ref, mask_ref, out_ref):
    # Grid = (splits, steps).  out_ref is a per-split (row_tile, 1) f32
    # accumulator that stays resident in VMEM across the inner axis.
    i = pl.program_id(1)

    @pl.when(i == 0)
    def _():
        out_ref[...] = jnp.zeros_like(out_ref)

    # Upcast AFTER the (possibly bf16) tile has landed in VMEM, so HBM traffic
    # stays at the input's native width.
    logits = logits_ref[...].astype(jnp.float32)            # (TM, V)
    tgt = target_ref[...]                                    # (TM, 1) int32
    msk = mask_ref[...].astype(jnp.float32)                  # (TM, 1)

    # Numerically-stable log-softmax pieces. `shifted` is reused by both the
    # exp pass and the target-logit gather (the row max cancels in the loss).
    m = jnp.max(logits, axis=-1, keepdims=True)              # (TM, 1)
    shifted = logits - m                                      # (TM, V)
    sumexp = jnp.sum(jnp.exp(shifted), axis=-1, keepdims=True)

    lane_ids = jax.lax.broadcasted_iota(jnp.int32, shifted.shape, 1)
    hit = lane_ids == tgt                                     # one-hot on lanes
    tgt_shifted = jnp.sum(jnp.where(hit, shifted, 0.0), axis=-1, keepdims=True)

    # CE = logsumexp - target_logit = log(sumexp) - (target_logit - max)
    loss = jnp.log(sumexp) - tgt_shifted                      # (TM, 1)
    out_ref[...] += loss * msk


@functools.partial(jax.jit, static_argnames=("row_tile", "num_splits"))
def language_model_criterion(inputs, target, mask, *, row_tile=None,
                             num_splits=None):
    """
    inputs: (N, seq_len, vocab) float (f32 or bf16 — streamed at native width)
    target: (N, seq_len)        int
    mask:   (N, seq_len)        float
    returns scalar f32: sum(CE(inputs, target) * mask) / N

    Note: out-of-range targets (e.g. ignore_index=-1 padding) only behave
    correctly if their mask is 0 (same contract as the original kernel).
    """
    n, seq_len, vocab = inputs.shape
    # PyTorch module truncates target/mask to inputs' seq_len
    target = target[:, :seq_len]
    mask = mask[:, :seq_len]

    rows = n * seq_len
    logits2d = inputs.reshape(rows, vocab)                    # keep native dtype
    target2d = target.reshape(rows, 1).astype(jnp.int32)
    mask2d = mask.reshape(rows, 1).astype(jnp.float32)

    vmem_limit = _vmem_limit_bytes()
    if row_tile is None:
        row_tile = _pick_row_tile(rows, vocab, logits2d.dtype.itemsize,
                                  vmem_limit)
    assert row_tile % 8 == 0, "row_tile must be a multiple of 8"

    num_blocks = (rows + row_tile - 1) // row_tile
    if num_splits is None:
        num_splits = 2 if num_blocks >= 2 else 1              # v7x: 2 TensorCores
    num_blocks = ((num_blocks + num_splits - 1) // num_splits) * num_splits
    steps = num_blocks // num_splits
    rows_padded = num_blocks * row_tile

    if rows_padded != rows:
        pad = rows_padded - rows
        # Padded rows carry mask=0, so they contribute exactly 0 loss.
        logits2d = jnp.pad(logits2d, ((0, pad), (0, 0)))
        target2d = jnp.pad(target2d, ((0, pad), (0, 0)))
        mask2d = jnp.pad(mask2d, ((0, pad), (0, 0)))

    blk = lambda p, i: (p * steps + i, 0)
    partials = pl.pallas_call(
        _lm_criterion_kernel,
        out_shape=jax.ShapeDtypeStruct((num_splits * row_tile, 1), jnp.float32),
        grid_spec=pltpu.PrefetchScalarGridSpec(
            num_scalar_prefetch=0,
            grid=(num_splits, steps),
            in_specs=[
                pl.BlockSpec((row_tile, vocab), blk),
                pl.BlockSpec((row_tile, 1), blk),
                pl.BlockSpec((row_tile, 1), blk),
            ],
            out_specs=pl.BlockSpec((row_tile, 1), lambda p, i: (p, 0)),
        ),
        compiler_params=pltpu.CompilerParams(
            dimension_semantics=("parallel", "arbitrary"),
            vmem_limit_bytes=vmem_limit,
        ),
    )(logits2d, target2d, mask2d)

    return jnp.sum(partials) / jnp.float32(n)


def _reference(inputs, target, mask):
    # pure-JAX reference for sanity check
    n, s, v = inputs.shape
    logits = inputs.reshape(-1, v).astype(jnp.float32)
    tgt = target.reshape(-1)
    msk = mask.reshape(-1).astype(jnp.float32)
    lse = jax.scipy.special.logsumexp(logits, axis=-1)
    tgt_logit = jnp.take_along_axis(logits, tgt[:, None], axis=-1)[:, 0]
    loss = lse - tgt_logit
    return jnp.sum(loss * msk) / n


if __name__ == "__main__":
    key = jax.random.PRNGKey(0)
    k1, k2, k3, k4, k5, k6 = jax.random.split(key, 6)

    # Case 1: small f32 problem, single block.
    N, SEQ, VOCAB = 2, 8, 32
    inputs = jax.random.normal(k1, (N, SEQ, VOCAB), dtype=jnp.float32)
    target = jax.random.randint(k2, (N, SEQ), 0, VOCAB, dtype=jnp.int32)
    mask = (jax.random.uniform(k3, (N, SEQ)) > 0.3).astype(jnp.float32)

    out = jax.block_until_ready(language_model_criterion(inputs, target, mask))
    ref = _reference(inputs, target, mask)
    assert jnp.allclose(out, ref, rtol=1e-5, atol=1e-5), (out, ref)

    # Case 2: ragged row count (padding path) + forced multi-block grid with a
    # parallel split (exercises the 2-TensorCore layout and accumulation).
    N2, SEQ2, VOCAB2 = 3, 7, 160
    inputs2 = jax.random.normal(k4, (N2, SEQ2, VOCAB2), dtype=jnp.float32)
    target2 = jax.random.randint(k5, (N2, SEQ2), 0, VOCAB2, dtype=jnp.int32)
    mask2 = (jax.random.uniform(k6, (N2, SEQ2)) > 0.3).astype(jnp.float32)

    out2 = jax.block_until_ready(
        language_model_criterion(inputs2, target2, mask2, row_tile=8,
                                 num_splits=2))
    ref2 = _reference(inputs2, target2, mask2)
    assert jnp.allclose(out2, ref2, rtol=1e-5, atol=1e-5), (out2, ref2)

    # Case 3: bf16 logits streamed at native width, upcast in-kernel.
    inputs_bf16 = inputs.astype(jnp.bfloat16)
    out3 = jax.block_until_ready(
        language_model_criterion(inputs_bf16, target, mask))
    ref3 = _reference(inputs_bf16.astype(jnp.float32), target, mask)
    assert jnp.allclose(out3, ref3, rtol=2e-2, atol=2e-2), (out3, ref3)

    print("KERNEL_OK")
</pallas_src>

<mosaic_0001>
module attributes {stable_mosaic.version = 11 : i64} {
  func.func @_lm_criterion_kernel(%arg0: i32, %arg1: i32, %arg2: memref<16x32xf32, #tpu.memory_space<vmem>>, %arg3: memref<16x1xi32, #tpu.memory_space<vmem>>, %arg4: memref<16x1xf32, #tpu.memory_space<vmem>>, %arg5: memref<16x1xf32, #tpu.memory_space<vmem>>) attributes {dimension_semantics = [#tpu.dimension_semantics<parallel>, #tpu.dimension_semantics<arbitrary>], iteration_bounds = array<i64: 1, 1>, scalar_prefetch = 0 : i64, scratch_operands = 0 : i64, tpu.core_type = #tpu.core_type<tc>, window_params = [{transform_indices = @transform_0, window_bounds = array<i64: 16, 32>}, {transform_indices = @transform_1, window_bounds = array<i64: 16, 1>}, {transform_indices = @transform_2, window_bounds = array<i64: 16, 1>}, {transform_indices = @transform_3, window_bounds = array<i64: 16, 1>}]} {
    %c0_i32 = arith.constant 0 : i32
    %0 = arith.cmpi eq, %arg1, %c0_i32 : i32
    %1 = arith.extui %0 : i1 to i32
    %c0_i32_0 = arith.constant 0 : i32
    %2 = arith.cmpi ne, %1, %c0_i32_0 : i32
    scf.if %2 {
      %cst_13 = arith.constant 0.000000e+00 : f32
      %26 = vector.broadcast %cst_13 : f32 to vector<16x1xf32>
      %c0_14 = arith.constant 0 : index
      %c0_15 = arith.constant 0 : index
      %27 = vector.load %arg5[%c0_14, %c0_15] : memref<16x1xf32, #tpu.memory_space<vmem>>, vector<16x1xf32>
      tpu.vector_store %arg5[%c0_14, %c0_15], %26 {strides = array<i32>} : memref<16x1xf32, #tpu.memory_space<vmem>>, vector<16x1xf32>,
    } else {
    }
    %c0 = arith.constant 0 : index
    %c0_1 = arith.constant 0 : index
    %3 = vector.load %arg2[%c0, %c0_1] : memref<16x32xf32, #tpu.memory_space<vmem>>, vector<16x32xf32>
    %c0_2 = arith.constant 0 : index
    %c0_3 = arith.constant 0 : index
    %4 = vector.load %arg3[%c0_2, %c0_3] : memref<16x1xi32, #tpu.memory_space<vmem>>, vector<16x1xi32>
    %c0_4 = arith.constant 0 : index
    %c0_5 = arith.constant 0 : index
    %5 = vector.load %arg4[%c0_4, %c0_5] : memref<16x1xf32, #tpu.memory_space<vmem>>, vector<16x1xf32>
    %cst = arith.constant dense<0xFF800000> : vector<16xf32>
    %6 = vector.multi_reduction <maximumf>, %3, %cst [1] : vector<16x32xf32> to vector<16xf32>
    %7 = vector.shape_cast %6 : vector<16xf32> to vector<16x1xf32>
    %8 = vector.broadcast %7 : vector<16x1xf32> to vector<16x32xf32>
    %9 = arith.subf %3, %8 : vector<16x32xf32>
    %10 = math.exp %9 : vector<16x32xf32>
    %cst_6 = arith.constant dense<0.000000e+00> : vector<16xf32>
    %11 = vector.multi_reduction <add>, %10, %cst_6 [1] : vector<16x32xf32> to vector<16xf32>
    %12 = vector.shape_cast %11 : vector<16xf32> to vector<16x1xf32>
    %13 = tpu.iota {dimensions = array<i32: 1>} : vector<16x32xi32>
    %14 = vector.broadcast %4 : vector<16x1xi32> to vector<16x32xi32>
    %15 = arith.cmpi eq, %13, %14 : vector<16x32xi32>
    %cst_7 = arith.constant 0.000000e+00 : f32
    %16 = vector.broadcast %cst_7 : f32 to vector<16x32xf32>
    %17 = arith.select %15, %9, %16 : vector<16x32xi1>, vector<16x32xf32>
    %cst_8 = arith.constant dense<0.000000e+00> : vector<16xf32>
    %18 = vector.multi_reduction <add>, %17, %cst_8 [1] : vector<16x32xf32> to vector<16xf32>
    %19 = vector.shape_cast %18 : vector<16xf32> to vector<16x1xf32>
    %20 = math.log %12 : vector<16x1xf32>
    %21 = arith.subf %20, %19 : vector<16x1xf32>
    %c0_9 = arith.constant 0 : index
    %c0_10 = arith.constant 0 : index
    %22 = vector.load %arg5[%c0_9, %c0_10] : memref<16x1xf32, #tpu.memory_space<vmem>>, vector<16x1xf32>
    %23 = arith.mulf %21, %5 : vector<16x1xf32>
    %24 = arith.addf %22, %23 : vector<16x1xf32>
    %c0_11 = arith.constant 0 : index
    %c0_12 = arith.constant 0 : index
    %25 = vector.load %arg5[%c0_11, %c0_12] : memref<16x1xf32, #tpu.memory_space<vmem>>, vector<16x1xf32>
    tpu.vector_store %arg5[%c0_11, %c0_12], %24 {strides = array<i32>} : memref<16x1xf32, #tpu.memory_space<vmem>>, vector<16x1xf32>,
    return
  }
  func.func @transform_0(%arg0: i32, %arg1: i32) -> (i32, i32) {
    %c1_i32 = arith.constant 1 : i32
    %0 = arith.muli %arg0, %c1_i32 : i32
    %1 = arith.addi %0, %arg1 : i32
    %c0_i32 = arith.constant 0 : i32
    %c0_i32_0 = arith.constant 0 : i32
    return %1, %c0_i32 : i32, i32
  }
  func.func @transform_1(%arg0: i32, %arg1: i32) -> (i32, i32) {
    %c1_i32 = arith.constant 1 : i32
    %0 = arith.muli %arg0, %c1_i32 : i32
    %1 = arith.addi %0, %arg1 : i32
    %c0_i32 = arith.constant 0 : i32
    %c0_i32_0 = arith.constant 0 : i32
    return %1, %c0_i32 : i32, i32
  }
  func.func @transform_2(%arg0: i32, %arg1: i32) -> (i32, i32) {
    %c1_i32 = arith.constant 1 : i32
    %0 = arith.muli %arg0, %c1_i32 : i32
    %1 = arith.addi %0, %arg1 : i32
    %c0_i32 = arith.constant 0 : i32
    %c0_i32_0 = arith.constant 0 : i32
    return %1, %c0_i32 : i32, i32
  }
  func.func @transform_3(%arg0: i32, %arg1: i32) -> (i32, i32) {
    %c0_i32 = arith.constant 0 : i32
    %c0_i32_0 = arith.constant 0 : i32
    return %arg0, %c0_i32 : i32, i32
  }
}

</mosaic_0001>

<llo_original>
// kernel: language_model_criterion.1
$region0: #{language_model_criterion.1}
  #allocation0 [shape = 'u32[]', space=smem, size = 0x4, offset = 0x4, fixed_abs, tag = 'smem constant byte address 0x4 - core index']
  #allocation1 [shape = 'u32[144,128]{1,0:T(1,128)}', space=vmem, size = 0x12000, scoped, tag = 'internal scratch']
  %s0 = inlined_call_operand.vmem [shape: f32[16,32], index: 0, kind: input, shape index: {}]
  %s1 = inlined_call_operand.vmem [shape: s32[16,1], index: 1, kind: input, shape index: {}]
  %s2 = inlined_call_operand.vmem [shape: f32[16,1], index: 2, kind: input, shape index: {}]
  %s3 = inlined_call_operand.vmem [shape: f32[16,1], index: 3, kind: output, shape index: {}]
  %s4 = sld [smem:[#allocation0]]
  $region26: #{language_model_criterion.1} parent=0
    _
  %s6 = ssub.s32 1, %s4
  %s7 = scalar_select 0, %s6, %s4
  // Predicated region
  $region2: #{language_model_criterion.1} parent=0 // pred_check
    _
  $region3: #{language_model_criterion.1} parent=0 // pred_check_branch
    %9 = sbr.rel (0) target = $region5
  $region4: #{language_model_criterion.1} parent=0 // pred_region
    %s10 = sadd.s32 0, 0
    %s11 = smul.u32 2, %s10
    %p12 = scmp.lt.s32.totalorder %s11, 1
    %s13 = scalar_select %p12, %s11, 1
    %s14 = smul.addr %s13, 8
    %s15 = scalar_lea.vmem %s0, %s14
    %s16 = sadd.s32 0, 0
    %s17 = smul.u32 2, %s16
  $region5: #{language_model_criterion.1} parent=0 // pred_fallthru
    _
  // Predicated region
  $region6: #{language_model_criterion.1} parent=0 // pred_check
    _
  $region7: #{language_model_criterion.1} parent=0 // pred_check_branch
    %19 = sbr.rel (0) target = $region9
  $region8: #{language_model_criterion.1} parent=0 // pred_region
    %s20 = sadd.s32 0, 0
    %s21 = smul.u32 2, %s20
    %p22 = scmp.lt.s32.totalorder %s21, 1
    %s23 = scalar_select %p22, %s21, 1
    %s24 = smul.addr %s23, 8
    %s25 = scalar_lea.vmem %s1, %s24
    %s26 = sadd.s32 0, 0
    %s27 = smul.u32 2, %s26
  $region9: #{language_model_criterion.1} parent=0 // pred_fallthru
    _
  // Predicated region
  $region10: #{language_model_criterion.1} parent=0 // pred_check
    _
  $region11: #{language_model_criterion.1} parent=0 // pred_check_branch
    %29 = sbr.rel (0) target = $region13
  $region12: #{language_model_criterion.1} parent=0 // pred_region
    %s30 = sadd.s32 0, 0
    %s31 = smul.u32 2, %s30
    %p32 = scmp.lt.s32.totalorder %s31, 1
    %s33 = scalar_select %p32, %s31, 1
    %s34 = smul.addr %s33, 8
    %s35 = scalar_lea.vmem %s2, %s34
    %s36 = sadd.s32 0, 0
    %s37 = smul.u32 2, %s36
  $region13: #{language_model_criterion.1} parent=0 // pred_fallthru
    _
  %s38 = sadd.s32 0, 0
  %s39 = smul.u32 2, %s38
  %p40 = scmp.lt.s32.totalorder %s39, 1
  %s41 = scalar_select %p40, %s39, 1
  %s42 = smul.addr %s41, 8
  %s43 = scalar_lea.vmem %s0, %s42
  %s44 = sadd.s32 0, 0
  %s45 = smul.u32 2, %s44
  %p46 = scmp.lt.s32.totalorder %s45, 1
  %s47 = scalar_select %p46, %s45, 1
  %s48 = smul.addr %s47, 8
  %s49 = scalar_lea.vmem %s1, %s48
  %s50 = sadd.s32 0, 0
  %s51 = smul.u32 2, %s50
  %p52 = scmp.lt.s32.totalorder %s51, 1
  %s53 = scalar_select %p52, %s51, 1
  %s54 = smul.addr %s53, 8
  %s55 = scalar_lea.vmem %s2, %s54
  %s56 = sadd.s32 0, 0
  %s57 = smul.u32 2, %s56
  %p58 = scmp.lt.s32.totalorder %s57, 1
  %s59 = scalar_select %p58, %s57, 1
  %s60 = smul.addr %s59, 8
  %s61 = scalar_lea.vmem %s0, %s60
  %s62 = sadd.s32 0, 0
  %s63 = smul.u32 2, %s62
  %s64 = sadd.s32 0, 0
  %s65 = smul.u32 2, %s64
  %p66 = scmp.lt.s32.totalorder %s65, 1
  %s67 = scalar_select %p66, %s65, 1
  %s68 = smul.addr %s67, 8
  %s69 = scalar_lea.vmem %s1, %s68
  %s70 = sadd.s32 0, 0
  %s71 = smul.u32 2, %s70
  %s72 = sadd.s32 0, 0
  %s73 = smul.u32 2, %s72
  %p74 = scmp.lt.s32.totalorder %s73, 1
  %s75 = scalar_select %p74, %s73, 1
  %s76 = smul.addr %s75, 8
  %s77 = scalar_lea.vmem %s2, %s76
  %s78 = sadd.s32 0, 0
  %s79 = smul.u32 2, %s78
  %p80 = scmp.eq.s32.totalorder 0, 0
  // Predicated region
  $region14: #{language_model_criterion.1} parent=0 // pred_check
    %p81 = pneg %p80
  $region15: #{language_model_criterion.1} parent=0 // pred_check_branch
    %83 = sbr.rel (%p81) target = $region17
  $region16: #{language_model_criterion.1} parent=0 // pred_region
    %vm84 = vcmask 7168
    %85 = vst.msk [vmem:[%s3] sm:$0xff] %vm84, 0.0
    %86 = vst.msk [vmem:[%s3 + $0x8] sm:$0xff] %vm84, 0.0
  $region17: #{language_model_criterion.1} parent=0 // pred_fallthru
    _
  %v87 = vld [vmem:[%s61] sm:$0xff]
  %v88 = vld [vmem:[%s61 + $0x8] sm:$0xff]
  %v89 = vld [vmem:[%s69] sm:$0xff]
  %v90 = vld [vmem:[%s69 + $0x8] sm:$0xff]
  %v91 = vld [vmem:[%s77] sm:$0xff]
  %v92 = vld [vmem:[%s77 + $0x8] sm:$0xff]
  %vm93 = vcmask 261120
  %v94 = vsel %vm93, %v87, -inf
  %95 = vmax.xlane.f32.xlu0 %v94
  %v96 = vpop.xlane.xlu0 %95
  %v97 = vsel %vm93, %v88, -inf
  %98 = vmax.xlane.f32.xlu0 %v97
  %v99 = vpop.xlane.xlu0 %98
  %v100 = vsub.f32 %v87, %v96
  %v101 = vsub.f32 %v88, %v99
  %v102 = vmul.f32 %v100, 1.442695
  %v103 = vpow.pop %v102
  %v104 = vmul.f32 %v101, 1.442695
  %v105 = vpow.pop %v104
  %v106 = vsel %vm93, %v103, 0.0
  %107 = vadd.xlane.f32.xlu0 %v106
  %v108 = vpop.xlane.xlu0 %107
  %v109 = vsel %vm93, %v105, 0.0
  %110 = vadd.xlane.f32.xlu0 %v109
  %v111 = vpop.xlane.xlu0 %110
  %v112 = vlaneseq
  %v113 = vand.u32 %v112, 127
  %114 = vset.pattern.permute.xlu0 0
  %115 = vperm.xlu0 %114, %v89
  %v116 = vpop.permute.xlu0 %115
  %117 = vset.pattern.permute.xlu0 0
  %118 = vperm.xlu0 %117, %v90
  %v119 = vpop.permute.xlu0 %118
  %vm120 = vcmp.eq.s32.totalorder %v113, %v116
  %vm121 = vcmp.eq.s32.totalorder %v113, %v119
  %v122 = vsel %vm120, %v100, 0.0
  %v123 = vsel %vm121, %v101, 0.0
  %v124 = vsel %vm93, %v122, 0.0
  %125 = vadd.xlane.f32.xlu0 %v124
  %v126 = vpop.xlane.xlu0 %125
  %v127 = vsel %vm93, %v123, 0.0
  %128 = vadd.xlane.f32.xlu0 %v127
  %v129 = vpop.xlane.xlu0 %128
  %v130 = vlog2.pop %v108
  %v131 = vmul.f32 %v130, 0.6931472
  %v132 = vlog2.pop %v111
  %v133 = vmul.f32 %v132, 0.6931472
  %v134 = vsub.f32 %v131, %v126
  %v135 = vsub.f32 %v133, %v129
  %v136 = vld [vmem:[%s3] sm:$0xff]
  %v137 = vld [vmem:[%s3 + $0x8] sm:$0xff]
  %v138 = vmul.f32 %v134, %v91
  %v139 = vmul.f32 %v135, %v92
  %v140 = vadd.f32 %v136, %v138
  %v141 = vadd.f32 %v137, %v139
  %vm142 = vcmask 7168
  %143 = vst.msk [vmem:[%s3] sm:$0xff] %vm142, %v140
  %144 = vst.msk [vmem:[%s3 + $0x8] sm:$0xff] %vm142, %v141
  // Predicated region
  $region18: #{language_model_criterion.1} parent=0 // pred_check
    _
  $region19: #{language_model_criterion.1} parent=0 // pred_check_branch
    %146 = sbr.rel (0) target = $region21
  $region20: #{language_model_criterion.1} parent=0 // pred_region
    _
  $region21: #{language_model_criterion.1} parent=0 // pred_fallthru
    _
  // Predicated region
  $region22: #{language_model_criterion.1} parent=0 // pred_check
    _
  $region23: #{language_model_criterion.1} parent=0 // pred_check_branch
    %148 = sbr.rel (0) target = $region25
  $region24: #{language_model_criterion.1} parent=0 // pred_region
    _
  $region25: #{language_model_criterion.1} parent=0 // pred_fallthru
    _

</llo_original>
